<compile_context>
chip_gen: v5e
topology: v5e:2x2
jax: 0.10.0
libtpu: 0.0.40
codegen_flags: <defaults>
</compile_context>

<pallas_src>
import functools

import jax
import jax.numpy as jnp
from jax.experimental import pallas as pl
from jax.experimental.pallas import tpu as pltpu


def _attention_kernel(g_ref, x_ref, wg_ref, wx_ref, c_ref, wp_ref, cp_ref,
                      o_ref):
    """One (spatial-tile, batch) grid step.

    g_ref : (F_g, TM)   x_ref : (F_l, TM)      activations, lane-dense
    wg_ref: (F_int, F_g)  wx_ref: (F_int, F_l) f32 conv weights, BN scale folded
    c_ref : (F_int, 1)   combined BN/conv shift of the g- and x-branches (f32)
    wp_ref: (F_int, 1)   psi conv weight (BN scale folded), single out channel
    cp_ref: (1,) SMEM    psi shift scalar (f32)
    o_ref : (F_l, TM)
    """
    g = g_ref[...]
    x = x_ref[...]

    # Conv1x1 + BN (scale pre-folded into the f32 weights); f32 accumulation.
    g1 = jnp.dot(wg_ref[...], g, preferred_element_type=jnp.float32)
    x1 = jnp.dot(wx_ref[...], x, preferred_element_type=jnp.float32)
    act = jnp.maximum(g1 + x1 + c_ref[...], 0.0)          # ReLU, (F_int, TM)

    # psi conv has one output channel: VPU multiply + sublane (XLU) reduce
    # instead of an N=1 MXU matmul.  Both slots have slack (mem-bound kernel).
    logit = jnp.sum(act * wp_ref[...], axis=0, keepdims=True) + cp_ref[0]
    psi = jax.nn.sigmoid(logit)                            # (1, TM), f32

    # Gating multiply.  Keep the large elementwise stream in the I/O dtype on
    # bf16 (v6e/v7x have bf16 VALUs); f32 path otherwise.
    if o_ref.dtype == jnp.float32:
        o_ref[...] = x.astype(jnp.float32) * psi
    else:
        o_ref[...] = (x * psi.astype(x.dtype)).astype(o_ref.dtype)


def _fold_bn(conv_bias, gamma, beta, running_mean, running_var, eps=1e-5):
    """Fold conv bias + eval-mode BatchNorm into (scale, shift) per channel."""
    scale = gamma / jnp.sqrt(running_var + eps)
    shift = (conv_bias - running_mean) * scale + beta
    return scale, shift


def _round_up(a, b):
    return (a + b - 1) // b * b


def _ru8(c):
    return _round_up(c, 8)


@functools.partial(jax.jit, static_argnames=("tile_m",))
def attention_block(g, x, params, tile_m=32768):
    """g: (N, F_g, H, W), x: (N, F_l, H, W) in NCHW.  Returns (N, F_l, H, W)."""
    N, F_g, H, W = g.shape
    Nx, F_l, Hx, Wx = x.shape
    assert (H, W) == (Hx, Wx) and N == Nx, \
        "bilinear-resize branch (g spatial != x spatial) not implemented"
    F_int = params["wg"].shape[0]
    HW = H * W
    itemsize = jnp.dtype(x.dtype).itemsize

    # --- fold eval-mode BN into conv weights (scale) + additive shift ------
    sg, cg = _fold_bn(params["bg"], params["g_gamma"], params["g_beta"],
                      params["g_mean"], params["g_var"])
    sx, cx = _fold_bn(params["bx"], params["x_gamma"], params["x_beta"],
                      params["x_mean"], params["x_var"])
    sp, cp = _fold_bn(params["bp"], params["p_gamma"], params["p_beta"],
                      params["p_mean"], params["p_var"])

    # Weights stay in f32 (tiny tensors) so folding the BN scale never loses
    # precision even when the activation I/O dtype is bf16.
    wg_s = (params["wg"] * sg[:, None]).astype(jnp.float32)       # (F_int, F_g)
    wx_s = (params["wx"] * sx[:, None]).astype(jnp.float32)       # (F_int, F_l)
    c_gx = (cg + cx)[:, None].astype(jnp.float32)                 # (F_int, 1)
    wp_s = (params["wp"][0] * sp[0])[:, None].astype(jnp.float32) # (F_int, 1)
    cp_s = cp.astype(jnp.float32).reshape(1)                      # (1,) SMEM

    # --- channels-major slabs, NO padding: (N, C, HW) -----------------------
    g3 = g.reshape(N, F_g, HW)
    x3 = x.reshape(N, F_l, HW)

    # --- spatial tile: as big as VMEM allows (8-sublane-padded accounting) --
    vmem_budget = 40 << 20
    bytes_per_lane = (2 * (_ru8(F_g) + 2 * _ru8(F_l)) * itemsize   # 2x-buffered I/O
                      + 6 * _ru8(F_int) * 4)                       # f32 intermediates
    tm_cap = max((vmem_budget // bytes_per_lane) // 128 * 128, 128)
    tm = min(tile_m, tm_cap, _round_up(HW, 128))
    tm = max(tm // 128 * 128, 128)                                 # lane-dense tile

    grid_m = pl.cdiv(HW, tm)          # ragged trailing block handled by Pallas
    grid = (grid_m, N)                # spatial tiles first: feeds both v7x TCs

    act_spec = lambda C: pl.BlockSpec((None, C, tm), lambda m, b: (b, 0, m))
    full2d = lambda shp: pl.BlockSpec(shp, lambda m, b: (0, 0))

    # VMEM limit: sublane-padded activation tiles (double-buffered), f32
    # intermediates, plus margin for (8,128)-padded weight tiles.
    vmem_limit = (2 * (_ru8(F_g) + 2 * _ru8(F_l)) * tm * itemsize
                  + 6 * _ru8(F_int) * tm * 4
                  + (2 << 20))
    vmem_limit = int(min(max(vmem_limit, 16 << 20), 48 << 20))

    cost = pl.CostEstimate(
        flops=2 * F_int * (F_g + F_l + 1) * N * HW,
        transcendentals=N * HW,
        bytes_accessed=(F_g + 2 * F_l) * N * HW * itemsize
        + 4 * F_int * (F_g + F_l + 2) + 4,
    )

    out3 = pl.pallas_call(
        _attention_kernel,
        out_shape=jax.ShapeDtypeStruct((N, F_l, HW), x.dtype),
        grid_spec=pltpu.PrefetchScalarGridSpec(
            num_scalar_prefetch=0,
            grid=grid,
            in_specs=[
                act_spec(F_g),                               # g   (N,F_g,HW)
                act_spec(F_l),                               # x   (N,F_l,HW)
                full2d((F_int, F_g)),                        # Wg * sg
                full2d((F_int, F_l)),                        # Wx * sx
                full2d((F_int, 1)),                          # cg + cx
                full2d((F_int, 1)),                          # wp * sp
                pl.BlockSpec(memory_space=pltpu.MemorySpace.SMEM),  # cp scalar
            ],
            out_specs=pl.BlockSpec((None, F_l, tm), lambda m, b: (b, 0, m)),
        ),
        compiler_params=pltpu.CompilerParams(
            dimension_semantics=("parallel", "parallel"),
            vmem_limit_bytes=vmem_limit),
        cost_estimate=cost,
    )(g3, x3, wg_s, wx_s, c_gx, wp_s, cp_s)

    return out3.reshape(N, F_l, H, W)


def init_params(key, F_g, F_l, F_int, dtype=jnp.float32):
    """Deterministic synthetic parameters matching the PyTorch module shapes.

    Conv2d(Cin, Cout, 1) weights are stored in PyTorch layout (Cout, Cin).
    """
    ks = jax.random.split(key, 6)
    return {
        # W_g
        "wg": jax.random.normal(ks[0], (F_int, F_g), dtype) * 0.1,
        "bg": jax.random.normal(ks[1], (F_int,), dtype) * 0.1,
        "g_gamma": jnp.ones((F_int,), dtype),
        "g_beta": jnp.zeros((F_int,), dtype),
        "g_mean": jnp.zeros((F_int,), dtype),
        "g_var": jnp.ones((F_int,), dtype),
        # W_x
        "wx": jax.random.normal(ks[2], (F_int, F_l), dtype) * 0.1,
        "bx": jax.random.normal(ks[3], (F_int,), dtype) * 0.1,
        "x_gamma": jnp.ones((F_int,), dtype),
        "x_beta": jnp.zeros((F_int,), dtype),
        "x_mean": jnp.zeros((F_int,), dtype),
        "x_var": jnp.ones((F_int,), dtype),
        # psi
        "wp": jax.random.normal(ks[4], (1, F_int), dtype) * 0.1,
        "bp": jax.random.normal(ks[5], (1,), dtype) * 0.1,
        "p_gamma": jnp.ones((1,), dtype),
        "p_beta": jnp.zeros((1,), dtype),
        "p_mean": jnp.zeros((1,), dtype),
        "p_var": jnp.ones((1,), dtype),
    }


def reference(g, x, params):
    """Pure-JAX reference of the same (eval-mode BN) forward (NCHW)."""
    def conv1x1(a, w, b):                  # w: (Cout, Cin)
        y = jnp.einsum("nchw,oc->nohw", a, w)
        return y + b[None, :, None, None]

    def bn(a, gamma, beta, mean, var, eps=1e-5):
        s = gamma / jnp.sqrt(var + eps)
        return (a - mean[None, :, None, None]) * s[None, :, None, None] \
            + beta[None, :, None, None]

    g1 = bn(conv1x1(g, params["wg"], params["bg"]),
            params["g_gamma"], params["g_beta"],
            params["g_mean"], params["g_var"])
    x1 = bn(conv1x1(x, params["wx"], params["bx"]),
            params["x_gamma"], params["x_beta"],
            params["x_mean"], params["x_var"])
    act = jnp.maximum(g1 + x1, 0.0)
    psi = jax.nn.sigmoid(bn(conv1x1(act, params["wp"], params["bp"]),
                            params["p_gamma"], params["p_beta"],
                            params["p_mean"], params["p_var"]))
    return x * psi


if __name__ == "__main__":
    key = jax.random.PRNGKey(0)
    k_g, k_x, k_p = jax.random.split(key, 3)

    N, H, W = 2, 16, 16
    F_g, F_l, F_int = 8, 4, 8

    g = jax.random.normal(k_g, (N, F_g, H, W), jnp.float32)
    x = jax.random.normal(k_x, (N, F_l, H, W), jnp.float32)
    params = init_params(k_p, F_g, F_l, F_int)

    out = attention_block(g, x, params)
    out = jax.block_until_ready(out)

    ref = reference(g, x, params)
    assert out.shape == (N, F_l, H, W)
    assert jnp.allclose(out, ref, atol=5e-5, rtol=5e-5), \
        f"max err {jnp.max(jnp.abs(out - ref))}"

    print("KERNEL_OK")
</pallas_src>

<mosaic_0001>
module attributes {stable_mosaic.version = 11 : i64} {
  func.func @_attention_kernel(%arg0: i32, %arg1: i32, %arg2: memref<1x8x256xf32, #tpu.memory_space<vmem>>, %arg3: memref<1x4x256xf32, #tpu.memory_space<vmem>>, %arg4: memref<8x8xf32, #tpu.memory_space<vmem>>, %arg5: memref<8x4xf32, #tpu.memory_space<vmem>>, %arg6: memref<8x1xf32, #tpu.memory_space<vmem>>, %arg7: memref<8x1xf32, #tpu.memory_space<vmem>>, %arg8: memref<1xf32, #tpu.memory_space<smem>>, %arg9: memref<1x4x256xf32, #tpu.memory_space<vmem>>) attributes {dimension_semantics = [#tpu.dimension_semantics<parallel>, #tpu.dimension_semantics<parallel>], iteration_bounds = array<i64: 1, 2>, scalar_prefetch = 0 : i64, scratch_operands = 0 : i64, tpu.core_type = #tpu.core_type<tc>, window_params = [{transform_indices = @transform_0, window_bounds = array<i64: 1, 8, 256>}, {transform_indices = @transform_1, window_bounds = array<i64: 1, 4, 256>}, {pipeline_mode = #tpu.pipeline_mode<synchronous>, transform_indices = @transform_2, window_bounds = array<i64: 8, 8>}, {pipeline_mode = #tpu.pipeline_mode<synchronous>, transform_indices = @transform_3, window_bounds = array<i64: 8, 4>}, {pipeline_mode = #tpu.pipeline_mode<synchronous>, transform_indices = @transform_4, window_bounds = array<i64: 8, 1>}, {pipeline_mode = #tpu.pipeline_mode<synchronous>, transform_indices = @transform_5, window_bounds = array<i64: 8, 1>}, {transform_indices = @transform_6, window_bounds = array<i64: 1>}, {transform_indices = @transform_7, window_bounds = array<i64: 1, 4, 256>}]} {
    %c0 = arith.constant 0 : index
    %c0_0 = arith.constant 0 : index
    %c0_1 = arith.constant 0 : index
    %0 = vector.load %arg2[%c0, %c0_0, %c0_1] : memref<1x8x256xf32, #tpu.memory_space<vmem>>, vector<1x8x256xf32>
    %1 = vector.shape_cast %0 : vector<1x8x256xf32> to vector<8x256xf32>
    %c0_2 = arith.constant 0 : index
    %c0_3 = arith.constant 0 : index
    %c0_4 = arith.constant 0 : index
    %2 = vector.load %arg3[%c0_2, %c0_3, %c0_4] : memref<1x4x256xf32, #tpu.memory_space<vmem>>, vector<1x4x256xf32>
    %3 = vector.shape_cast %2 : vector<1x4x256xf32> to vector<4x256xf32>
    %c0_5 = arith.constant 0 : index
    %c0_6 = arith.constant 0 : index
    %4 = vector.load %arg4[%c0_5, %c0_6] : memref<8x8xf32, #tpu.memory_space<vmem>>, vector<8x8xf32>
    %cst = arith.constant dense<0.000000e+00> : vector<8x256xf32>
    %5 = tpu.matmul %4, %1, %cst {dimension_numbers = #tpu.dot_dimension_numbers<[1], [0], [0], [1], [0, 0, 1, 1], [], []>} : vector<8x8xf32>, vector<8x256xf32>, vector<8x256xf32> -> vector<8x256xf32>
    %c0_7 = arith.constant 0 : index
    %c0_8 = arith.constant 0 : index
    %6 = vector.load %arg5[%c0_7, %c0_8] : memref<8x4xf32, #tpu.memory_space<vmem>>, vector<8x4xf32>
    %cst_9 = arith.constant dense<0.000000e+00> : vector<8x256xf32>
    %7 = tpu.matmul %6, %3, %cst_9 {dimension_numbers = #tpu.dot_dimension_numbers<[1], [0], [0], [1], [0, 0, 1, 1], [], []>} : vector<8x4xf32>, vector<4x256xf32>, vector<8x256xf32> -> vector<8x256xf32>
    %8 = arith.addf %5, %7 : vector<8x256xf32>
    %c0_10 = arith.constant 0 : index
    %c0_11 = arith.constant 0 : index
    %9 = vector.load %arg6[%c0_10, %c0_11] : memref<8x1xf32, #tpu.memory_space<vmem>>, vector<8x1xf32>
    %10 = vector.broadcast %9 : vector<8x1xf32> to vector<8x256xf32>
    %11 = arith.addf %8, %10 : vector<8x256xf32>
    %cst_12 = arith.constant 0.000000e+00 : f32
    %12 = vector.broadcast %cst_12 : f32 to vector<8x256xf32>
    %13 = arith.maximumf %11, %12 : vector<8x256xf32>
    %c0_13 = arith.constant 0 : index
    %c0_14 = arith.constant 0 : index
    %14 = vector.load %arg7[%c0_13, %c0_14] : memref<8x1xf32, #tpu.memory_space<vmem>>, vector<8x1xf32>
    %15 = vector.broadcast %14 : vector<8x1xf32> to vector<8x256xf32>
    %16 = arith.mulf %13, %15 : vector<8x256xf32>
    %cst_15 = arith.constant dense<0.000000e+00> : vector<256xf32>
    %17 = vector.multi_reduction <add>, %16, %cst_15 [0] : vector<8x256xf32> to vector<256xf32>
    %18 = vector.shape_cast %17 : vector<256xf32> to vector<1x256xf32>
    %c0_16 = arith.constant 0 : index
    %19 = memref.load %arg8[%c0_16] : memref<1xf32, #tpu.memory_space<smem>>
    %20 = vector.broadcast %19 : f32 to vector<1x256xf32>
    %21 = arith.addf %18, %20 : vector<1x256xf32>
    %22 = arith.negf %21 : vector<1x256xf32>
    %23 = math.exp %22 : vector<1x256xf32>
    %cst_17 = arith.constant 1.000000e+00 : f32
    %24 = vector.broadcast %cst_17 : f32 to vector<1x256xf32>
    %25 = arith.addf %24, %23 : vector<1x256xf32>
    %26 = arith.divf %24, %25 : vector<1x256xf32>
    %27 = vector.broadcast %26 : vector<1x256xf32> to vector<4x256xf32>
    %28 = arith.mulf %3, %27 : vector<4x256xf32>
    %c0_18 = arith.constant 0 : index
    %c0_19 = arith.constant 0 : index
    %c0_20 = arith.constant 0 : index
    %29 = vector.load %arg9[%c0_18, %c0_19, %c0_20] : memref<1x4x256xf32, #tpu.memory_space<vmem>>, vector<1x4x256xf32>
    %30 = vector.shape_cast %29 : vector<1x4x256xf32> to vector<4x256xf32>
    %31 = vector.shape_cast %28 : vector<4x256xf32> to vector<1x4x256xf32>
    tpu.vector_store %arg9[%c0_18, %c0_19, %c0_20], %31 {strides = array<i32>} : memref<1x4x256xf32, #tpu.memory_space<vmem>>, vector<1x4x256xf32>,
    return
  }
  func.func @transform_0(%arg0: i32, %arg1: i32) -> (i32, i32, i32) {
    %c0_i32 = arith.constant 0 : i32
    %c0_i32_0 = arith.constant 0 : i32
    return %arg1, %c0_i32, %arg0 : i32, i32, i32
  }
  func.func @transform_1(%arg0: i32, %arg1: i32) -> (i32, i32, i32) {
    %c0_i32 = arith.constant 0 : i32
    %c0_i32_0 = arith.constant 0 : i32
    return %arg1, %c0_i32, %arg0 : i32, i32, i32
  }
  func.func @transform_2(%arg0: i32, %arg1: i32) -> (i32, i32) {
    %c0_i32 = arith.constant 0 : i32
    %c0_i32_0 = arith.constant 0 : i32
    %c0_i32_1 = arith.constant 0 : i32
    return %c0_i32, %c0_i32_0 : i32, i32
  }
  func.func @transform_3(%arg0: i32, %arg1: i32) -> (i32, i32) {
    %c0_i32 = arith.constant 0 : i32
    %c0_i32_0 = arith.constant 0 : i32
    %c0_i32_1 = arith.constant 0 : i32
    return %c0_i32, %c0_i32_0 : i32, i32
  }
  func.func @transform_4(%arg0: i32, %arg1: i32) -> (i32, i32) {
    %c0_i32 = arith.constant 0 : i32
    %c0_i32_0 = arith.constant 0 : i32
    %c0_i32_1 = arith.constant 0 : i32
    return %c0_i32, %c0_i32_0 : i32, i32
  }
  func.func @transform_5(%arg0: i32, %arg1: i32) -> (i32, i32) {
    %c0_i32 = arith.constant 0 : i32
    %c0_i32_0 = arith.constant 0 : i32
    %c0_i32_1 = arith.constant 0 : i32
    return %c0_i32, %c0_i32_0 : i32, i32
  }
  func.func @transform_6(%arg0: i32, %arg1: i32) -> i32 {
    %c0_i32 = arith.constant 0 : i32
    %c0_i32_0 = arith.constant 0 : i32
    return %c0_i32 : i32
  }
  func.func @transform_7(%arg0: i32, %arg1: i32) -> (i32, i32, i32) {
    %c0_i32 = arith.constant 0 : i32
    %c0_i32_0 = arith.constant 0 : i32
    return %arg1, %c0_i32, %arg0 : i32, i32, i32
  }
}

</mosaic_0001>

<llo_original>
// kernel: attention_block.1
$region0: #{attention_block.1}
  #allocation0 [shape = 'u32[]', space=smem, size = 0x4, offset = 0x4, fixed_abs, tag = 'smem constant byte address 0x4 - core index']
  #allocation1 [shape = 'u32[72,128]{1,0:T(1,128)}', space=vmem, size = 0x9000, scoped, tag = 'internal scratch']
  #allocation2 [shape = 'f32[1]{0:T(128)S(6)}', space=smem, size = 0x200, scoped, tag = 'scoped memory for attention_block.1']
  %s0 = inlined_call_operand.vmem [shape: f32[2,8,256], index: 0, kind: input, shape index: {}]
  %s1 = inlined_call_operand.vmem [shape: f32[2,4,256], index: 1, kind: input, shape index: {}]
  %s2 = inlined_call_operand.vmem [shape: f32[8,8], index: 2, kind: input, shape index: {}]
  %s3 = inlined_call_operand.vmem [shape: f32[8,4], index: 3, kind: input, shape index: {}]
  %s4 = inlined_call_operand.vmem [shape: f32[8,1], index: 4, kind: input, shape index: {}]
  %s5 = inlined_call_operand.vmem [shape: f32[8,1], index: 5, kind: input, shape index: {}]
  %s6 = inlined_call_operand.<no memory space> [shape: f32[1], index: 6, kind: input, shape index: {}]
  %s7 = inlined_call_operand.vmem [shape: f32[2,4,256], index: 7, kind: output, shape index: {}]
  %s8 = sld [smem:[#allocation0]]
  $region61: #{attention_block.1} parent=0
    _
  %s10 = ssub.s32 1, %s8
  %s11 = scalar_select 0, %s10, %s8
  %12 = sst [smem:[#allocation2]] %s6
  loop: start=0, step=1, limit=4
  $region2: #{attention_block.1} parent=0 // loop_pre_header
    _
  $region3: #{attention_block.1} parent=0 // loop_header
    %s14 = sphi 0, %s18
    %p15 = scmp.ge.s32.totalorder %s14, 4
    %s21 = sphi 0, %s33
    %s22 = sphi 0, %s29
    %s23 = sphi 0, %s21
    %s24 = sphi 0, %s22
    %s25 = sphi 0, %s23
    %s26 = sphi 0, %s24
    %s38 = sphi 0, %s40
    %s41 = sphi 0, %s38
    %s42 = sphi 0, %s41
    %s58 = sphi 0, %s42
    %s66 = sphi 0, %s68
    %s69 = sphi 0, %s66
    %s70 = sphi 0, %s69
    %s86 = sphi 0, %s70
    %s90 = sphi 0, %s90
    %s92 = sphi 0, %s90
    %s93 = sphi 0, %s92
    %s107 = sphi 0, %s93
    %s111 = sphi 0, %s111
    %s113 = sphi 0, %s111
    %s114 = sphi 0, %s113
    %s128 = sphi 0, %s114
    %s132 = sphi 0, %s132
    %s134 = sphi 0, %s132
    %s135 = sphi 0, %s134
    %s149 = sphi 0, %s135
    %s153 = sphi 0, %s153
    %s155 = sphi 0, %s153
    %s156 = sphi 0, %s155
    %s170 = sphi 0, %s156
    %s174 = sphi 0, %s174
    %s176 = sphi 0, %s174
    %s177 = sphi 0, %s176
    %s191 = sphi 0, %s177
    %s199 = sphi 0, %s201
    %s202 = sphi 0, %s199
    %s203 = sphi 0, %s202
    %s219 = sphi 0, %s203
  $region4: #{attention_block.1} parent=0 // loop_header_branch
    %17 = sbr.rel (%p15) target = $region8
  $region5: #{attention_block.1} parent=0 // loop_body
    %s19 = ssub.s32 %s14, 1
    %s20 = ssub.s32 %s14, 2
    %s27 = sadd.s32 1, %s22
    %p28 = scmp.ge.s32.totalorder %s27, 2
    %s29 = scalar_select %p28, 0, %s27
    %s30 = sadd.s32 1, %s21
    %s31 = scalar_select %p28, %s30, %s21
    %p32 = scmp.ge.s32.totalorder %s31, 1
    %s33 = scalar_select %p32, 0, %s31
    %s34 = ssub.s32 %s22, %s29
    %s35 = ssub.s32 %s21, %s33
    %s36 = sor.u32 %s34, %s35
    %p37 = scmp.eq.s32.totalorder %s36, 0
    %s39 = sadd.s32 %s38, 1
    %s40 = scalar_select %p37, %s38, %s39
    %p43 = pneg %p37
    %p44 = scmp.eq.s32.totalorder %s14, 1
    %p45 = por %p43, %p44
    %p46 = scmp.ne.s32.totalorder %s38, %s41
    %p47 = scmp.eq.s32.totalorder %s14, 0
    %p48 = por %p46, %p47
    %p49 = scmp.ne.s32.totalorder %s38, %s41
    %p50 = scmp.eq.s32.totalorder %s19, 1
    %p51 = por %p49, %p50
    %p52 = scmp.ne.s32.totalorder %s41, %s42
    %p53 = scmp.eq.s32.totalorder %s19, 0
    %p54 = por %p52, %p53
    %p55 = scmp.ne.s32.totalorder %s41, %s42
    %p56 = scmp.eq.s32.totalorder %s20, 1
    %p57 = por %p55, %p56
    %p59 = scmp.ne.s32.totalorder %s42, %s58
    %p60 = scmp.eq.s32.totalorder %s20, 0
    %p61 = por %p59, %p60
    %s62 = ssub.s32 %s22, %s29
    %s63 = ssub.s32 %s21, %s33
    %s64 = sor.u32 %s62, %s63
    %p65 = scmp.eq.s32.totalorder %s64, 0
    %s67 = sadd.s32 %s66, 1
    %s68 = scalar_select %p65, %s66, %s67
    %p71 = pneg %p65
    %p72 = scmp.eq.s32.totalorder %s14, 1
    %p73 = por %p71, %p72
    %p74 = scmp.ne.s32.totalorder %s66, %s69
    %p75 = scmp.eq.s32.totalorder %s14, 0
    %p76 = por %p74, %p75
    %p77 = scmp.ne.s32.totalorder %s66, %s69
    %p78 = scmp.eq.s32.totalorder %s19, 1
    %p79 = por %p77, %p78
    %p80 = scmp.ne.s32.totalorder %s69, %s70
    %p81 = scmp.eq.s32.totalorder %s19, 0
    %p82 = por %p80, %p81
    %p83 = scmp.ne.s32.totalorder %s69, %s70
    %p84 = scmp.eq.s32.totalorder %s20, 1
    %p85 = por %p83, %p84
    %p87 = scmp.ne.s32.totalorder %s70, %s86
    %p88 = scmp.eq.s32.totalorder %s20, 0
    %p89 = por %p87, %p88
    %s91 = sadd.s32 %s90, 1
    %p94 = scmp.eq.s32.totalorder %s14, 1
    %p95 = scmp.ne.s32.totalorder %s90, %s92
    %p96 = scmp.eq.s32.totalorder %s14, 0
    %p97 = por %p95, %p96
    %p98 = scmp.ne.s32.totalorder %s90, %s92
    %p99 = scmp.eq.s32.totalorder %s19, 1
    %p100 = por %p98, %p99
    %p101 = scmp.ne.s32.totalorder %s92, %s93
    %p102 = scmp.eq.s32.totalorder %s19, 0
    %p103 = por %p101, %p102
    %p104 = scmp.ne.s32.totalorder %s92, %s93
    %p105 = scmp.eq.s32.totalorder %s20, 1
    %p106 = por %p104, %p105
    %p108 = scmp.ne.s32.totalorder %s93, %s107
    %p109 = scmp.eq.s32.totalorder %s20, 0
    %p110 = por %p108, %p109
    %s112 = sadd.s32 %s111, 1
    %p115 = scmp.eq.s32.totalorder %s14, 1
    %p116 = scmp.ne.s32.totalorder %s111, %s113
    %p117 = scmp.eq.s32.totalorder %s14, 0
    %p118 = por %p116, %p117
    %p119 = scmp.ne.s32.totalorder %s111, %s113
    %p120 = scmp.eq.s32.totalorder %s19, 1
    %p121 = por %p119, %p120
    %p122 = scmp.ne.s32.totalorder %s113, %s114
    %p123 = scmp.eq.s32.totalorder %s19, 0
    %p124 = por %p122, %p123
    %p125 = scmp.ne.s32.totalorder %s113, %s114
    %p126 = scmp.eq.s32.totalorder %s20, 1
    %p127 = por %p125, %p126
    %p129 = scmp.ne.s32.totalorder %s114, %s128
    %p130 = scmp.eq.s32.totalorder %s20, 0
    %p131 = por %p129, %p130
    %s133 = sadd.s32 %s132, 1
    %p136 = scmp.eq.s32.totalorder %s14, 1
    %p137 = scmp.ne.s32.totalorder %s132, %s134
    %p138 = scmp.eq.s32.totalorder %s14, 0
    %p139 = por %p137, %p138
    %p140 = scmp.ne.s32.totalorder %s132, %s134
    %p141 = scmp.eq.s32.totalorder %s19, 1
    %p142 = por %p140, %p141
    %p143 = scmp.ne.s32.totalorder %s134, %s135
    %p144 = scmp.eq.s32.totalorder %s19, 0
    %p145 = por %p143, %p144
    %p146 = scmp.ne.s32.totalorder %s134, %s135
    %p147 = scmp.eq.s32.totalorder %s20, 1
    %p148 = por %p146, %p147
    %p150 = scmp.ne.s32.totalorder %s135, %s149
    %p151 = scmp.eq.s32.totalorder %s20, 0
    %p152 = por %p150, %p151
    %s154 = sadd.s32 %s153, 1
    %p157 = scmp.eq.s32.totalorder %s14, 1
    %p158 = scmp.ne.s32.totalorder %s153, %s155
    %p159 = scmp.eq.s32.totalorder %s14, 0
    %p160 = por %p158, %p159
    %p161 = scmp.ne.s32.totalorder %s153, %s155
    %p162 = scmp.eq.s32.totalorder %s19, 1
    %p163 = por %p161, %p162
    %p164 = scmp.ne.s32.totalorder %s155, %s156
    %p165 = scmp.eq.s32.totalorder %s19, 0
    %p166 = por %p164, %p165
    %p167 = scmp.ne.s32.totalorder %s155, %s156
    %p168 = scmp.eq.s32.totalorder %s20, 1
    %p169 = por %p167, %p168
    %p171 = scmp.ne.s32.totalorder %s156, %s170
    %p172 = scmp.eq.s32.totalorder %s20, 0
    %p173 = por %p171, %p172
    %s175 = sadd.s32 %s174, 1
    %p178 = scmp.eq.s32.totalorder %s14, 1
    %p179 = scmp.ne.s32.totalorder %s174, %s176
    %p180 = scmp.eq.s32.totalorder %s14, 0
    %p181 = por %p179, %p180
    %p182 = scmp.ne.s32.totalorder %s174, %s176
    %p183 = scmp.eq.s32.totalorder %s19, 1
    %p184 = por %p182, %p183
    %p185 = scmp.ne.s32.totalorder %s176, %s177
    %p186 = scmp.eq.s32.totalorder %s19, 0
    %p187 = por %p185, %p186
    %p188 = scmp.ne.s32.totalorder %s176, %s177
    %p189 = scmp.eq.s32.totalorder %s20, 1
    %p190 = por %p188, %p189
    %p192 = scmp.ne.s32.totalorder %s177, %s191
    %p193 = scmp.eq.s32.totalorder %s20, 0
    %p194 = por %p192, %p193
    %s195 = ssub.s32 %s22, %s29
    %s196 = ssub.s32 %s21, %s33
    %s197 = sor.u32 %s195, %s196
    %p198 = scmp.eq.s32.totalorder %s197, 0
    %s200 = sadd.s32 %s199, 1
    %s201 = scalar_select %p198, %s199, %s200
    %p204 = pneg %p198
    %p205 = scmp.eq.s32.totalorder %s14, 1
    %p206 = por %p204, %p205
    %p207 = scmp.ne.s32.totalorder %s199, %s202
    %p208 = scmp.eq.s32.totalorder %s14, 0
    %p209 = por %p207, %p208
    %p210 = scmp.ne.s32.totalorder %s199, %s202
    %p211 = scmp.eq.s32.totalorder %s19, 1
    %p212 = por %p210, %p211
    %p213 = scmp.ne.s32.totalorder %s202, %s203
    %p214 = scmp.eq.s32.totalorder %s19, 0
    %p215 = por %p213, %p214
    %p216 = scmp.ne.s32.totalorder %s202, %s203
    %p217 = scmp.eq.s32.totalorder %s20, 1
    %p218 = por %p216, %p217
    %p220 = scmp.ne.s32.totalorder %s203, %s219
    %p221 = scmp.eq.s32.totalorder %s20, 0
    %p222 = por %p220, %p221
    %p223 = scmp.le.s32.totalorder 1, %s14
    %p224 = scmp.lt.s32.totalorder %s14, 3
    %p225 = pnand %p223, %p224
    %p226 = pneg %p225
    // Predicated region
    $region9: #{attention_block.1} parent=5 // pred_check
      _
    $region10: #{attention_block.1} parent=5 // pred_check_branch
      %228 = sbr.rel (%p225) target = $region12
    $region11: #{attention_block.1} parent=5 // pred_region
      %s229 = ssub.s32 %s14, 1
      // Predicated region
      $region13: #{attention_block.1} parent=11 // pred_check
        %p230 = pneg %p103
      $region14: #{attention_block.1} parent=11 // pred_check_branch
        %232 = sbr.rel (%p230) target = $region16
      $region15: #{attention_block.1} parent=11 // pred_region
        _
      $region16: #{attention_block.1} parent=11 // pred_fallthru
        _
      // Predicated region
      $region17: #{attention_block.1} parent=11 // pred_check
        %p233 = pneg %p124
      $region18: #{attention_block.1} parent=11 // pred_check_branch
        %235 = sbr.rel (%p233) target = $region20
      $region19: #{attention_block.1} parent=11 // pred_region
        _
      $region20: #{attention_block.1} parent=11 // pred_fallthru
        _
      // Predicated region
      $region21: #{attention_block.1} parent=11 // pred_check
        %p236 = pneg %p145
      $region22: #{attention_block.1} parent=11 // pred_check_branch
        %238 = sbr.rel (%p236) target = $region24
      $region23: #{attention_block.1} parent=11 // pred_region
        _
      $region24: #{attention_block.1} parent=11 // pred_fallthru
        _
      // Predicated region
      $region25: #{attention_block.1} parent=11 // pred_check
        %p239 = pneg %p166
      $region26: #{attention_block.1} parent=11 // pred_check_branch
        %241 = sbr.rel (%p239) target = $region28
      $region27: #{attention_block.1} parent=11 // pred_region
        _
      $region28: #{attention_block.1} parent=11 // pred_fallthru
        _
      // Predicated region
      $region29: #{attention_block.1} parent=11 // pred_check
        %p242 = pneg %p187
      $region30: #{attention_block.1} parent=11 // pred_check_branch
        %244 = sbr.rel (%p242) target = $region32
      $region31: #{attention_block.1} parent=11 // pred_region
        _
      $region32: #{attention_block.1} parent=11 // pred_fallthru
        _
    $region12: #{attention_block.1} parent=5 // pred_fallthru
      _
    %p245 = scmp.lt.s32.totalorder %s14, 2
    // Predicated region
    $region33: #{attention_block.1} parent=5 // pred_check
      %p246 = pneg %p245
    $region34: #{attention_block.1} parent=5 // pred_check_branch
      %248 = sbr.rel (%p246) target = $region36
    $region35: #{attention_block.1} parent=5 // pred_region
      // Predicated region
      $region37: #{attention_block.1} parent=35 // pred_check
        %p249 = pneg %p48
      $region38: #{attention_block.1} parent=35 // pred_check_branch
        %251 = sbr.rel (%p249) target = $region40
      $region39: #{attention_block.1} parent=35 // pred_region
        %s252 = smul.u32 2, %s21
        %p253 = scmp.lt.s32.totalorder %s22, 1
        %s254 = scalar_select %p253, %s22, 1
        %p255 = scmp.lt.s32.totalorder %s252, 1
        %s256 = scalar_select %p255, %s252, 1
        %s257 = smul.addr %s254, 2
        %s258 = sadd.s32 %s256, %s257
        %s259 = smul.addr %s258, 8
        %s260 = scalar_lea.vmem %s0, %s259
        %s261 = smul.u32 2, %s21
      $region40: #{attention_block.1} parent=35 // pred_fallthru
        _
      // Predicated region
      $region41: #{attention_block.1} parent=35 // pred_check
        %p262 = pneg %p76
      $region42: #{attention_block.1} parent=35 // pred_check_branch
        %264 = sbr.rel (%p262) target = $region44
      $region43: #{attention_block.1} parent=35 // pred_region
        %s265 = smul.u32 2, %s21
        %p266 = scmp.lt.s32.totalorder %s22, 1
        %s267 = scalar_select %p266, %s22, 1
        %p268 = scmp.lt.s32.totalorder %s265, 1
        %s269 = scalar_select %p268, %s265, 1
        %s270 = smul.addr %s267, 2
        %s271 = sadd.s32 %s269, %s270
        %s272 = smul.addr %s271, 4
        %s273 = scalar_lea.vmem %s1, %s272
        %s274 = smul.u32 2, %s21
      $region44: #{attention_block.1} parent=35 // pred_fallthru
        _
    $region36: #{attention_block.1} parent=5 // pred_fallthru
      _
    %p275 = scmp.le.s32.totalorder 1, %s14
    %p276 = scmp.lt.s32.totalorder %s14, 3
    %p277 = pnand %p275, %p276
    %p278 = pneg %p277
    // Predicated region
    $region45: #{attention_block.1} parent=5 // pred_check
      _
    $region46: #{attention_block.1} parent=5 // pred_check_branch
      %280 = sbr.rel (%p277) target = $region48
    $region47: #{attention_block.1} parent=5 // pred_region
      %s281 = ssub.s32 %s14, 1
      %s282 = smul.u32 2, %s23
      %p283 = scmp.lt.s32.totalorder %s24, 1
      %s284 = scalar_select %p283, %s24, 1
      %p285 = scmp.lt.s32.totalorder %s282, 1
      %s286 = scalar_select %p285, %s282, 1
      %s287 = smul.addr %s284, 2
      %s288 = sadd.s32 %s286, %s287
      %s289 = smul.addr %s288, 8
      %s290 = scalar_lea.vmem %s0, %s289
      %p291 = pneg %p54
      %p292 = pneg %p51
      %s293 = smul.u32 2, %s23
      %p294 = scmp.lt.s32.totalorder %s24, 1
      %s295 = scalar_select %p294, %s24, 1
      %p296 = scmp.lt.s32.totalorder %s293, 1
      %s297 = scalar_select %p296, %s293, 1
      %s298 = smul.addr %s295, 2
      %s299 = sadd.s32 %s297, %s298
      %s300 = smul.addr %s299, 4
      %s301 = scalar_lea.vmem %s1, %s300
      %p302 = pneg %p82
      %p303 = pneg %p79
      %p304 = pneg %p103
      %p305 = pneg %p100
      %p306 = pneg %p124
      %p307 = pneg %p121
      %p308 = pneg %p145
      %p309 = pneg %p142
      %p310 = pneg %p166
      %p311 = pneg %p163
      %p312 = pneg %p187
      %p313 = pneg %p184
      %p314 = pneg %p215
      %p315 = pneg %p212
      %s316 = smul.u32 2, %s23
      %p317 = scmp.lt.s32.totalorder %s24, 1
      %s318 = scalar_select %p317, %s24, 1
      %p319 = scmp.lt.s32.totalorder %s316, 1
      %s320 = scalar_select %p319, %s316, 1
      %s321 = smul.addr %s318, 2
      %s322 = sadd.s32 %s320, %s321
      %s323 = smul.addr %s322, 4
      %s324 = scalar_lea.vmem %s7, %s323
      %s325 = smul.u32 2, %s23
      %p326 = scmp.lt.s32.totalorder %s24, 1
      %s327 = scalar_select %p326, %s24, 1
      %p328 = scmp.lt.s32.totalorder %s325, 1
      %s329 = scalar_select %p328, %s325, 1
      %s330 = smul.addr %s327, 2
      %s331 = sadd.s32 %s329, %s330
      %s332 = smul.addr %s331, 8
      %s333 = scalar_lea.vmem %s0, %s332
      %s334 = smul.u32 2, %s23
      %s335 = smul.u32 2, %s23
      %p336 = scmp.lt.s32.totalorder %s24, 1
      %s337 = scalar_select %p336, %s24, 1
      %p338 = scmp.lt.s32.totalorder %s335, 1
      %s339 = scalar_select %p338, %s335, 1
      %s340 = smul.addr %s337, 2
      %s341 = sadd.s32 %s339, %s340
      %s342 = smul.addr %s341, 4
      %s343 = scalar_lea.vmem %s1, %s342
      %s344 = smul.u32 2, %s23
      %s345 = smul.u32 2, %s23
      %p346 = scmp.lt.s32.totalorder %s24, 1
      %s347 = scalar_select %p346, %s24, 1
      %p348 = scmp.lt.s32.totalorder %s345, 1
      %s349 = scalar_select %p348, %s345, 1
      %s350 = smul.addr %s347, 2
      %s351 = sadd.s32 %s349, %s350
      %s352 = smul.addr %s351, 4
      %s353 = scalar_lea.vmem %s7, %s352
      %s354 = smul.u32 2, %s23
      %v355 = vld [vmem:[%s333] sm:$0xff]
      %v356 = vld [vmem:[%s333 + $0x8] sm:$0xff]
      %v357 = vld [vmem:[%s343] sm:$0xff]
      %v358 = vld [vmem:[%s2] sm:$0xff]
      %v359 = vld [vmem:[%s3] sm:$0xff]
      %361 = vst [vmem:[#allocation1] ss:$2 sm:$0xff] %v357
      %v362 = vld.sshfl [vmem:[#allocation1] sm:$0xff pattern:$0x75316420]
      %v363 = vld.sshfl [vmem:[#allocation1 + $0x8] sm:$0xff pattern:$0x75316420]
      %vm364 = vcmask 31744
      %v366 = vsel %vm364, %v359, 0
      %vm368 = vcmask 1043456
      %v369 = vsel %vm368, %v362, 0
      %v371 = vsel %vm368, %v363, 0
      %373 = vmatpush.msra.mxu0 0.0
      %374 = vmatpush.msra.mxu0 0.0
      %375 = vmatpush.msra.mxu0 0.0
      %376 = vmatpush.msra.mxu0 0.0
      %377 = vmatpush.msra.mxu0 0.0
      %378 = vmatpush.msra.mxu0 0.0
      %379 = vmatpush.msra.mxu0 0.0
      %380 = vmatpush.msra.mxu0 0.0
      %381 = vmatpush.msra.mxu0 0.0
      %382 = vmatpush.msra.mxu0 0.0
      %383 = vmatpush.msra.mxu0 0.0
      %384 = vmatpush.msra.mxu0 0.0
      %385 = vmatpush.msra.mxu0 0.0
      %386 = vmatpush.msra.mxu0 0.0
      %387 = vmatpush.msra.mxu0 0.0
      %388 = vmatpush.msra.mxu0 %v369
      %389 = vmatmul.f32.gmra.mxu0 %v366
      %v390 = vpop.f32.mrf.mxu0
      %v391 = vadd.f32 0.0, %v390
      %392 = vdwg.mxu0
      %393 = vmatpush.msra.mxu0 0.0
      %394 = vmatpush.msra.mxu0 0.0
      %395 = vmatpush.msra.mxu0 0.0
      %396 = vmatpush.msra.mxu0 0.0
      %397 = vmatpush.msra.mxu0 0.0
      %398 = vmatpush.msra.mxu0 0.0
      %399 = vmatpush.msra.mxu0 0.0
      %400 = vmatpush.msra.mxu0 0.0
      %401 = vmatpush.msra.mxu0 0.0
      %402 = vmatpush.msra.mxu0 0.0
      %403 = vmatpush.msra.mxu0 0.0
      %404 = vmatpush.msra.mxu0 0.0
      %405 = vmatpush.msra.mxu0 0.0
      %406 = vmatpush.msra.mxu0 0.0
      %407 = vmatpush.msra.mxu0 0.0
      %408 = vmatpush.msra.mxu0 %v371
      %409 = vmatmul.f32.gmra.mxu0 %v366
      %v410 = vpop.f32.mrf.mxu0
      %v411 = vadd.f32 0.0, %v410
      %412 = vdwg.mxu0
      %vm413 = vcmask 64512
      %v415 = vsel %vm413, %v358, 0
      %417 = vmatpush.msra.mxu0 0.0
      %418 = vmatpush.msra.mxu0 0.0
      %419 = vmatpush.msra.mxu0 0.0
      %420 = vmatpush.msra.mxu0 0.0
      %421 = vmatpush.msra.mxu0 0.0
      %422 = vmatpush.msra.mxu0 0.0
      %423 = vmatpush.msra.mxu0 0.0
      %424 = vmatpush.msra.mxu0 0.0
      %425 = vmatpush.msra.mxu0 0.0
      %426 = vmatpush.msra.mxu0 0.0
      %427 = vmatpush.msra.mxu0 0.0
      %428 = vmatpush.msra.mxu0 0.0
      %429 = vmatpush.msra.mxu0 0.0
      %430 = vmatpush.msra.mxu0 0.0
      %431 = vmatpush.msra.mxu0 0.0
      %432 = vmatpush.msra.mxu0 %v355
      %433 = vmatmul.f32.gmra.mxu0 %v415
      %v434 = vpop.f32.mrf.mxu0
      %v435 = vadd.f32 %v391, %v434
      %436 = vdwg.mxu0
      %437 = vmatpush.msra.mxu0 0.0
      %438 = vmatpush.msra.mxu0 0.0
      %439 = vmatpush.msra.mxu0 0.0
      %440 = vmatpush.msra.mxu0 0.0
      %441 = vmatpush.msra.mxu0 0.0
      %442 = vmatpush.msra.mxu0 0.0
      %443 = vmatpush.msra.mxu0 0.0
      %444 = vmatpush.msra.mxu0 0.0
      %445 = vmatpush.msra.mxu0 0.0
      %446 = vmatpush.msra.mxu0 0.0
      %447 = vmatpush.msra.mxu0 0.0
      %448 = vmatpush.msra.mxu0 0.0
      %449 = vmatpush.msra.mxu0 0.0
      %450 = vmatpush.msra.mxu0 0.0
      %451 = vmatpush.msra.mxu0 0.0
      %452 = vmatpush.msra.mxu0 %v356
      %453 = vmatmul.f32.gmra.mxu0 %v415
      %v454 = vpop.f32.mrf.mxu0
      %v455 = vadd.f32 %v411, %v454
      %456 = vdwg.mxu0
      %v457 = vld [vmem:[%s4] sm:$0xff]
      %459 = vset.pattern.permute.xlu0 0
      %460 = vperm.xlu0 %459, %v457
      %v461 = vpop.permute.xlu0 %460
      %v463 = vadd.f32 %v435, %v461
      %v464 = vadd.f32 %v455, %v461
      %v465 = vmax.f32 %v463, 0.0
      %v466 = vmax.f32 %v464, 0.0
      %v467 = vld [vmem:[%s5] sm:$0xff]
      %469 = vset.pattern.permute.xlu0 0
      %470 = vperm.xlu0 %469, %v467
      %v471 = vpop.permute.xlu0 %470
      %v473 = vmul.f32 %v465, %v471
      %v474 = vmul.f32 %v466, %v471
      %v475 = vrot.slane %v473, 4
      %v476 = vadd.f32 %v473, %v475
      %v477 = vrot.slane %v476, 2
      %v478 = vadd.f32 %v476, %v477
      %v479 = vrot.slane %v478, 1
      %v480 = vadd.f32 %v478, %v479
      %v481 = vrot.slane %v474, 4
      %v482 = vadd.f32 %v474, %v481
      %v483 = vrot.slane %v482, 2
      %v484 = vadd.f32 %v482, %v483
      %v485 = vrot.slane %v484, 1
      %v486 = vadd.f32 %v484, %v485
      %s487 = sld [smem:[#allocation2]]
      %v488 = vstv %s487
      %v489 = vadd.f32 %v480, %v488
      %v490 = vadd.f32 %v486, %v488
      %v491 = vxor.u32 %v489, 2147483648
      %v492 = vxor.u32 %v490, 2147483648
      %v493 = vmul.f32 %v491, 1.442695
      %v494 = vpow.pop %v493
      %v495 = vmul.f32 %v492, 1.442695
      %v496 = vpow.pop %v495
      %v497 = vadd.f32 %v494, 1.0
      %v498 = vadd.f32 %v496, 1.0
      %v499 = vrcp.pop %v497
      %v500 = vmul.f32 %v497, %v499
      %v501 = vsub.f32 1.0, %v500
      %v502 = vmul.f32 %v499, %v501
      %v503 = vadd.f32 %v499, %v502
      %vm504 = vweird.f32 %v497
      %vm505 = vweird.f32 %v499
      %vm506 = vmor %vm504, %vm505
      %v507 = vsel %vm506, %v499, %v503
      %v508 = vand.u32 2147483647, %v497
      %vm509 = vcmp.eq.f32.partialorder %v508, 8.507059e+37
      %v510 = vand.u32 %v497, 2147483648
      %v511 = vor.u32 1.1754944e-38, %v510
      %v512 = vsel %vm509, %v511, %v507
      %v513 = vmul.f32 1.0, %v512
      %v514 = vrcp.pop %v498
      %v515 = vmul.f32 %v498, %v514
      %v516 = vsub.f32 1.0, %v515
      %v517 = vmul.f32 %v514, %v516
      %v518 = vadd.f32 %v514, %v517
      %vm519 = vweird.f32 %v498
      %vm520 = vweird.f32 %v514
      %vm521 = vmor %vm519, %vm520
      %v522 = vsel %vm521, %v514, %v518
      %v523 = vand.u32 2147483647, %v498
      %vm524 = vcmp.eq.f32.partialorder %v523, 8.507059e+37
      %v525 = vand.u32 %v498, 2147483648
      %v526 = vor.u32 1.1754944e-38, %v525
      %v527 = vsel %vm524, %v526, %v522
      %v528 = vmul.f32 1.0, %v527
      %v531 = vrot.slane %v528, 4
      %v532 = vsel %vm368, %v513, %v531
      %v534 = vmul.f32 %v357, %v532
      %535 = vst [vmem:[%s353] sm:$0xff] %v534
      %s536 = smul.u32 2, %s23
      %p537 = scmp.lt.s32.totalorder %s24, 1
      %s538 = scalar_select %p537, %s24, 1
      %p539 = scmp.lt.s32.totalorder %s536, 1
      %s540 = scalar_select %p539, %s536, 1
      %s541 = smul.addr %s538, 2
      %s542 = sadd.s32 %s540, %s541
      %s543 = smul.addr %s542, 4
      %s544 = scalar_lea.vmem %s7, %s543
      // Predicated region
      $region49: #{attention_block.1} parent=47 // pred_check
        %p545 = pneg %p212
      $region50: #{attention_block.1} parent=47 // pred_check_branch
        %547 = sbr.rel (%p545) target = $region52
      $region51: #{attention_block.1} parent=47 // pred_region
        %s548 = smul.u32 2, %s23
      $region52: #{attention_block.1} parent=47 // pred_fallthru
        _
    $region48: #{attention_block.1} parent=5 // pred_fallthru
      _
    %p549 = scmp.le.s32.totalorder 2, %s14
    // Predicated region
    $region53: #{attention_block.1} parent=5 // pred_check
      %p550 = pneg %p549
    $region54: #{attention_block.1} parent=5 // pred_check_branch
      %552 = sbr.rel (%p550) target = $region56
    $region55: #{attention_block.1} parent=5 // pred_region
      %s553 = ssub.s32 %s14, 2
      // Predicated region
      $region57: #{attention_block.1} parent=55 // pred_check
        %p554 = pneg %p218
      $region58: #{attention_block.1} parent=55 // pred_check_branch
        %556 = sbr.rel (%p554) target = $region60
      $region59: #{attention_block.1} parent=55 // pred_region
        %s557 = smul.u32 2, %s25
        %p558 = scmp.lt.s32.totalorder %s26, 1
        %s559 = scalar_select %p558, %s26, 1
        %p560 = scmp.lt.s32.totalorder %s557, 1
        %s561 = scalar_select %p560, %s557, 1
        %s562 = smul.addr %s559, 2
        %s563 = sadd.s32 %s561, %s562
        %s564 = smul.addr %s563, 4
        %s565 = scalar_lea.vmem %s7, %s564
      $region60: #{attention_block.1} parent=55 // pred_fallthru
        _
    $region56: #{attention_block.1} parent=5 // pred_fallthru
      _
  $region6: #{attention_block.1} parent=0 // loop_footer
    %s18 = sadd.s32 1, %s14
  $region7: #{attention_block.1} parent=0 // loop_footer_branch
    %13 = sbr.rel target = $region3
  $region8: #{attention_block.1} parent=0 // loop_exit
    _

</llo_original>
